<compile_context>
chip_gen: v5e
topology: v5e:2x2
jax: 0.10.0
libtpu: 0.0.40
codegen_flags: <defaults>
</compile_context>

<pallas_src>
import functools

import jax
import jax.numpy as jnp
from jax.experimental import pallas as pl
from jax.experimental.pallas import tpu as pltpu

TRIM = 200  # the PyTorch module statically trims to [:200, :200]


def _trim_kernel(x_ref, o_ref, *, w_out):
    # x_ref: (bp, h_out, w_blk) with w_blk >= w_out; o_ref: (bp, h_out, w_out).
    # Rows are already restricted by the BlockSpec; only columns may need a
    # final in-VMEM slice (no-op when w_blk == w_out).
    o_ref[...] = x_ref[:, :, :w_out]


def _vmem_budget_bytes():
    """Generation-aware total buffer budget (2x input + 2x output buffers)."""
    try:
        kind = jax.devices()[0].device_kind.lower()
    except Exception:
        kind = ""
    if ("v6" in kind) or ("v7" in kind):
        # v6e: 128 MiB physical / 32 MiB default scoped; v7x: 64 MiB physical.
        # 24 MiB of buffers + explicit vmem_limit below is safe on both.
        return 24 * 1024 * 1024
    # v5e (16 MiB default scoped limit) and older / unknown generations.
    return 12 * 1024 * 1024


def trim(x):
    """Pallas equivalent of Trim.forward: x[:, :, :200, :200]. x is NCHW."""
    n, c, h, w = x.shape
    h_out = min(TRIM, h)
    w_out = min(TRIM, w)

    # Fast path: no trimming needed -> identity, skip the kernel entirely
    # (saves a full HBM read+write round trip).
    if h_out == h and w_out == w:
        return x

    nc = n * c

    # Read window per plane:
    #   rows:  h_out  (== full dim if h <= 200, else 200 which is 8-aligned)
    #   cols:  full w if w < 256, else 256 (128-lane multiple covering 200;
    #          a 200-lane read touches the same lane-tiles, so 256 is optimal)
    h_blk = h_out
    w_blk = w if w < 256 else 256

    # Planes per grid step: fill the VMEM budget (double-buffered input +
    # output blocks).  No divisor constraint -- cdiv handles a ragged last
    # block.  Cap at ceil(nc/2) so the "parallel" axis has >= 2 steps and can
    # split across both TensorCores on v7x megacore.
    itemsize = jnp.dtype(x.dtype).itemsize
    per_plane_bytes = 2 * (h_blk * w_blk + h_out * w_out) * itemsize
    budget = _vmem_budget_bytes()
    b_cap = max(1, budget // per_plane_bytes)
    bp = min(b_cap, pl.cdiv(nc, 2)) if nc >= 2 else 1
    grid_len = pl.cdiv(nc, bp)

    # Flattening (N, C) -> NC is a free leading-dim merge (no data movement).
    x3 = x.reshape(nc, h, w)

    read_bytes = nc * h_blk * w_blk * itemsize
    write_bytes = nc * h_out * w_out * itemsize

    y3 = pl.pallas_call(
        functools.partial(_trim_kernel, w_out=w_out),
        out_shape=jax.ShapeDtypeStruct((nc, h_out, w_out), x.dtype),
        grid=(grid_len,),
        in_specs=[
            pl.BlockSpec((bp, h_blk, w_blk), lambda i: (i, 0, 0)),
        ],
        out_specs=pl.BlockSpec((bp, h_out, w_out), lambda i: (i, 0, 0)),
        compiler_params=pltpu.CompilerParams(
            # Single independent plane axis: shard across TCs on v7x megacore.
            dimension_semantics=("parallel",),
            # Explicit headroom so the generation-aware budget never trips the
            # default scoped-VMEM limit (16 MiB v5e / 32 MiB v6e,v7x).
            vmem_limit_bytes=min(budget + 8 * 1024 * 1024, 48 * 1024 * 1024),
        ),
        # Pure memory op: tell XLA's scheduler the real byte traffic.
        cost_estimate=pl.CostEstimate(
            flops=0, transcendentals=0,
            bytes_accessed=read_bytes + write_bytes),
    )(x3)

    return y3.reshape(n, c, h_out, w_out)


if __name__ == "__main__":
    key = jax.random.PRNGKey(0)
    k1, k2, k3, k4, k5, k6 = jax.random.split(key, 6)

    # 1) No trimming needed (spatial < 200): fast-path identity.
    x_small = jax.random.normal(k1, (2, 4, 16, 16), dtype=jnp.float32)
    y_small = jax.block_until_ready(trim(x_small))
    assert y_small.shape == (2, 4, 16, 16)
    assert jnp.array_equal(y_small, x_small[:, :, :TRIM, :TRIM])

    # 2) Trim both spatial dims (256 -> 200).
    x_big = jax.random.normal(k2, (1, 2, 256, 256), dtype=jnp.float32)
    y_big = jax.block_until_ready(trim(x_big))
    assert y_big.shape == (1, 2, 200, 200)
    assert jnp.array_equal(y_big, x_big[:, :, :TRIM, :TRIM])

    # 3) Trim rows only (h > 200, w < 200).
    x_rows = jax.random.normal(k3, (1, 3, 224, 160), dtype=jnp.float32)
    y_rows = jax.block_until_ready(trim(x_rows))
    assert y_rows.shape == (1, 3, 200, 160)
    assert jnp.array_equal(y_rows, x_rows[:, :, :TRIM, :TRIM])

    # 4) Trim cols only (h < 200, w > 256 -> lane-restricted 256-wide read).
    x_cols = jax.random.normal(k4, (1, 2, 160, 320), dtype=jnp.float32)
    y_cols = jax.block_until_ready(trim(x_cols))
    assert y_cols.shape == (1, 2, 160, 200)
    assert jnp.array_equal(y_cols, x_cols[:, :, :TRIM, :TRIM])

    # 5) Awkward (prime) nc=13: exercises the cdiv grid with a ragged last
    #    block (bp = min(budget cap, ceil(13/2)) -> last block is partial).
    x_prime = jax.random.normal(k5, (1, 13, 256, 256), dtype=jnp.float32)
    y_prime = jax.block_until_ready(trim(x_prime))
    assert y_prime.shape == (1, 13, 200, 200)
    assert jnp.array_equal(y_prime, x_prime[:, :, :TRIM, :TRIM])

    # 6) Enough planes for several grid steps (plane batching + pipeline).
    x_many = jax.random.normal(k6, (2, 9, 256, 256), dtype=jnp.float32)
    y_many = jax.block_until_ready(trim(x_many))
    assert y_many.shape == (2, 9, 200, 200)
    assert jnp.array_equal(y_many, x_many[:, :, :TRIM, :TRIM])

    print("KERNEL_OK")
</pallas_src>

<mosaic_0001>
module attributes {stable_mosaic.version = 11 : i64} {
  func.func @_trim_kernel(%arg0: i32, %arg1: memref<1x200x256xf32, #tpu.memory_space<vmem>>, %arg2: memref<1x200x200xf32, #tpu.memory_space<vmem>>) attributes {dimension_semantics = [#tpu.dimension_semantics<parallel>], iteration_bounds = array<i64: 2>, scalar_prefetch = 0 : i64, scratch_operands = 0 : i64, tpu.core_type = #tpu.core_type<tc>, window_params = [{transform_indices = @transform_0, window_bounds = array<i64: 1, 200, 256>}, {transform_indices = @transform_1, window_bounds = array<i64: 1, 200, 200>}]} {
    %c0 = arith.constant 0 : index
    %c0_0 = arith.constant 0 : index
    %c0_1 = arith.constant 0 : index
    %0 = vector.load %arg1[%c0, %c0_0, %c0_1] : memref<1x200x256xf32, #tpu.memory_space<vmem>>, vector<1x200x200xf32>
    %c0_2 = arith.constant 0 : index
    %c0_3 = arith.constant 0 : index
    %c0_4 = arith.constant 0 : index
    %1 = vector.load %arg2[%c0_2, %c0_3, %c0_4] : memref<1x200x200xf32, #tpu.memory_space<vmem>>, vector<1x200x200xf32>
    tpu.vector_store %arg2[%c0_2, %c0_3, %c0_4], %0 {strides = array<i32>} : memref<1x200x200xf32, #tpu.memory_space<vmem>>, vector<1x200x200xf32>,
    return
  }
  func.func @transform_0(%arg0: i32) -> (i32, i32, i32) {
    %c0_i32 = arith.constant 0 : i32
    %c0_i32_0 = arith.constant 0 : i32
    %c0_i32_1 = arith.constant 0 : i32
    return %arg0, %c0_i32, %c0_i32_0 : i32, i32, i32
  }
  func.func @transform_1(%arg0: i32) -> (i32, i32, i32) {
    %c0_i32 = arith.constant 0 : i32
    %c0_i32_0 = arith.constant 0 : i32
    %c0_i32_1 = arith.constant 0 : i32
    return %arg0, %c0_i32, %c0_i32_0 : i32, i32, i32
  }
}

</mosaic_0001>

<llo_original>
// kernel: tpu_custom_call.1
$region0: #{tpu_custom_call.1}
  #allocation0 [shape = 'u32[]', space=smem, size = 0x4, offset = 0x4, fixed_abs, tag = 'smem constant byte address 0x4 - core index']
  #allocation1 [shape = 'u32[72,128]{1,0:T(1,128)}', space=vmem, size = 0x9000, scoped, tag = 'internal scratch']
  %s0 = inlined_call_operand.hbm [shape: f32[2,256,256], index: 0, kind: input, shape index: {}]
  %s1 = inlined_call_operand.hbm [shape: f32[2,200,200], index: 1, kind: output, shape index: {}]
  %s2 = sld [smem:[#allocation0]]
  $region41: #{tpu_custom_call.1} parent=0
    _
  %s4 = ssub.s32 1, %s2
  %s5 = scalar_select 0, %s4, %s2
  $region1: #{tpu_custom_call.1} parent=0
    #allocation2 [shape = 'u8[409600]{0}', space=vmem, size = 0x64000, scoped, tag = 'input window, operand 0']
    #allocation3 [shape = 's32[2]{0}', space=sflag, size = 0x8, scoped, tag = 'scoped memory for tpu_custom_call.1']
    #allocation4 [shape = 's32[2]{0}', space=sflag, size = 0x8, scoped, tag = 'scoped memory for tpu_custom_call.1']
    #allocation5 [shape = 'u8[409600]{0}', space=vmem, size = 0x64000, scoped, tag = 'output window, operand 0']
    %6 = vsyncpa [#allocation3], 0
    %s7 = scalar_lea.sflag [#allocation3], 1
    %8 = vsyncpa %s7, 0
    %9 = vsyncpa [#allocation4], 0
    %s10 = scalar_lea.sflag [#allocation4], 1
    %11 = vsyncpa %s10, 0
    loop: start=0, step=1, limit=4
    $region2: #{tpu_custom_call.1} parent=1 // loop_pre_header
      _
    $region3: #{tpu_custom_call.1} parent=1 // loop_header
      %s13 = sphi 0, %s17
      %p14 = scmp.ge.s32.totalorder %s13, 4
      %s23 = sphi 0, %s25
      %s26 = sphi 0, %s23
      %s27 = sphi 0, %s26
      %s43 = sphi 0, %s27
      %s49 = sphi 0, %s51
      %s52 = sphi 0, %s49
      %s53 = sphi 0, %s52
      %s69 = sphi 0, %s53
    $region4: #{tpu_custom_call.1} parent=1 // loop_header_branch
      %16 = sbr.rel (%p14) target = $region8
    $region5: #{tpu_custom_call.1} parent=1 // loop_body
      %s18 = ssub.s32 %s13, 1
      %s19 = ssub.s32 %s13, 2
      %s20 = sadd.s32 %s13, 1
      %s21 = ssub.s32 %s13, %s20
      %p22 = scmp.eq.s32.totalorder %s21, 0
      %s24 = sadd.s32 %s23, 1
      %s25 = scalar_select %p22, %s23, %s24
      %p28 = pneg %p22
      %p29 = scmp.eq.s32.totalorder %s13, 1
      %p30 = por %p28, %p29
      %p31 = scmp.ne.s32.totalorder %s23, %s26
      %p32 = scmp.eq.s32.totalorder %s13, 0
      %p33 = por %p31, %p32
      %p34 = scmp.ne.s32.totalorder %s23, %s26
      %p35 = scmp.eq.s32.totalorder %s18, 1
      %p36 = por %p34, %p35
      %p37 = scmp.ne.s32.totalorder %s26, %s27
      %p38 = scmp.eq.s32.totalorder %s18, 0
      %p39 = por %p37, %p38
      %p40 = scmp.ne.s32.totalorder %s26, %s27
      %p41 = scmp.eq.s32.totalorder %s19, 1
      %p42 = por %p40, %p41
      %p44 = scmp.ne.s32.totalorder %s27, %s43
      %p45 = scmp.eq.s32.totalorder %s19, 0
      %p46 = por %p44, %p45
      %s47 = ssub.s32 %s13, %s20
      %p48 = scmp.eq.s32.totalorder %s47, 0
      %s50 = sadd.s32 %s49, 1
      %s51 = scalar_select %p48, %s49, %s50
      %p54 = pneg %p48
      %p55 = scmp.eq.s32.totalorder %s13, 1
      %p56 = por %p54, %p55
      %p57 = scmp.ne.s32.totalorder %s49, %s52
      %p58 = scmp.eq.s32.totalorder %s13, 0
      %p59 = por %p57, %p58
      %p60 = scmp.ne.s32.totalorder %s49, %s52
      %p61 = scmp.eq.s32.totalorder %s18, 1
      %p62 = por %p60, %p61
      %p63 = scmp.ne.s32.totalorder %s52, %s53
      %p64 = scmp.eq.s32.totalorder %s18, 0
      %p65 = por %p63, %p64
      %p66 = scmp.ne.s32.totalorder %s52, %s53
      %p67 = scmp.eq.s32.totalorder %s19, 1
      %p68 = por %p66, %p67
      %p70 = scmp.ne.s32.totalorder %s53, %s69
      %p71 = scmp.eq.s32.totalorder %s19, 0
      %p72 = por %p70, %p71
      %p73 = scmp.le.s32.totalorder 1, %s13
      %p74 = scmp.lt.s32.totalorder %s13, 3
      %p75 = pnand %p73, %p74
      %p76 = pneg %p75
      // Predicated region
      $region9: #{tpu_custom_call.1} parent=5 // pred_check
        _
      $region10: #{tpu_custom_call.1} parent=5 // pred_check_branch
        %78 = sbr.rel (%p75) target = $region12
      $region11: #{tpu_custom_call.1} parent=5 // pred_region
        %s79 = ssub.s32 %s13, 1
      $region12: #{tpu_custom_call.1} parent=5 // pred_fallthru
        _
      %p80 = scmp.lt.s32.totalorder %s13, 2
      // Predicated region
      $region13: #{tpu_custom_call.1} parent=5 // pred_check
        %p81 = pneg %p80
      $region14: #{tpu_custom_call.1} parent=5 // pred_check_branch
        %83 = sbr.rel (%p81) target = $region16
      $region15: #{tpu_custom_call.1} parent=5 // pred_region
        // Predicated region
        $region17: #{tpu_custom_call.1} parent=15 // pred_check
          %p84 = pneg %p33
        $region18: #{tpu_custom_call.1} parent=15 // pred_check_branch
          %86 = sbr.rel (%p84) target = $region20
        $region19: #{tpu_custom_call.1} parent=15 // pred_region
          %s87 = sand.u32 %s23, 1
          %s88 = scalar_lea.sflag [#allocation3], %s87
          %s89 = sand.u32 %s23, 1
          %s90 = smul.addr %s89, 400
          %s91 = scalar_lea.vmem [#allocation2], %s90
          %93 = vsyncadd %s88, 0
          %s94 = smul.addr %s13, 64
          %s95 = smul.addr %s94, 8
          %s96 = scalar_lea.hbm %s0, %s95
          %s97 = sshll.u32 %s96, 4
          %s98 = int_to_ptr.hbm [resolvable:$true] %s97
          %s99 = sshll.u32 %s91, 4
          %s100 = int_to_ptr.vmem [resolvable:$true] %s99
          %105 = dma.hbm_to_vmem [thread:$0]  %s98, 6400, %s100, %s88, 256, 256, 16
        $region20: #{tpu_custom_call.1} parent=15 // pred_fallthru
          _
      $region16: #{tpu_custom_call.1} parent=5 // pred_fallthru
        _
      %p106 = scmp.le.s32.totalorder 1, %s13
      %p107 = scmp.lt.s32.totalorder %s13, 3
      %p108 = pnand %p106, %p107
      %p109 = pneg %p108
      // Predicated region
      $region21: #{tpu_custom_call.1} parent=5 // pred_check
        _
      $region22: #{tpu_custom_call.1} parent=5 // pred_check_branch
        %111 = sbr.rel (%p108) target = $region24
      $region23: #{tpu_custom_call.1} parent=5 // pred_region
        %s112 = ssub.s32 %s13, 1
        %s113 = sand.u32 %s26, 1
        %s114 = scalar_lea.sflag [#allocation3], %s113
        %s115 = sand.u32 %s26, 1
        %s116 = smul.addr %s115, 400
        %s117 = scalar_lea.vmem [#allocation2], %s116
        // Predicated region
        $region25: #{tpu_custom_call.1} parent=23 // pred_check
          %p118 = pneg %p39
        $region26: #{tpu_custom_call.1} parent=23 // pred_check_branch
          %120 = sbr.rel (%p118) target = $region28
        $region27: #{tpu_custom_call.1} parent=23 // pred_region
          %122 = dma.done %s114, 6400
        $region28: #{tpu_custom_call.1} parent=23 // pred_fallthru
          _
        %s123 = sand.u32 %s26, 1
        %s124 = scalar_lea.sflag [#allocation3], %s123
        %s125 = sand.u32 %s26, 1
        %s126 = smul.addr %s125, 400
        %s127 = scalar_lea.vmem [#allocation2], %s126
        %p128 = pneg %p39
        %p129 = pneg %p36
        %p130 = pneg %p65
        %p131 = pneg %p62
        %s132 = sand.u32 %s52, 1
        %s133 = scalar_lea.sflag [#allocation4], %s132
        %s134 = sand.u32 %s52, 1
        %s135 = smul.addr %s134, 400
        %s136 = scalar_lea.vmem [#allocation5], %s135
        %v137 = vld [vmem:[%s117] sm:$0xff]
        %v138 = vld [vmem:[%s117 + $0x8] sm:$0xff]
        %v139 = vld [vmem:[%s117 + $0x10] sm:$0xff]
        %v140 = vld [vmem:[%s117 + $0x18] sm:$0xff]
        %v141 = vld [vmem:[%s117 + $0x20] sm:$0xff]
        %v142 = vld [vmem:[%s117 + $0x28] sm:$0xff]
        %v143 = vld [vmem:[%s117 + $0x30] sm:$0xff]
        %v144 = vld [vmem:[%s117 + $0x38] sm:$0xff]
        %v145 = vld [vmem:[%s117 + $0x40] sm:$0xff]
        %v146 = vld [vmem:[%s117 + $0x48] sm:$0xff]
        %v147 = vld [vmem:[%s117 + $0x50] sm:$0xff]
        %v148 = vld [vmem:[%s117 + $0x58] sm:$0xff]
        %v149 = vld [vmem:[%s117 + $0x60] sm:$0xff]
        %v150 = vld [vmem:[%s117 + $0x68] sm:$0xff]
        %v151 = vld [vmem:[%s117 + $0x70] sm:$0xff]
        %v152 = vld [vmem:[%s117 + $0x78] sm:$0xff]
        %v153 = vld [vmem:[%s117 + $0x80] sm:$0xff]
        %v154 = vld [vmem:[%s117 + $0x88] sm:$0xff]
        %v155 = vld [vmem:[%s117 + $0x90] sm:$0xff]
        %v156 = vld [vmem:[%s117 + $0x98] sm:$0xff]
        %v157 = vld [vmem:[%s117 + $0xa0] sm:$0xff]
        %v158 = vld [vmem:[%s117 + $0xa8] sm:$0xff]
        %v159 = vld [vmem:[%s117 + $0xb0] sm:$0xff]
        %v160 = vld [vmem:[%s117 + $0xb8] sm:$0xff]
        %v161 = vld [vmem:[%s117 + $0xc0] sm:$0xff]
        %v162 = vld [vmem:[%s117 + $0xc8] sm:$0xff]
        %v163 = vld [vmem:[%s117 + $0xd0] sm:$0xff]
        %v164 = vld [vmem:[%s117 + $0xd8] sm:$0xff]
        %v165 = vld [vmem:[%s117 + $0xe0] sm:$0xff]
        %v166 = vld [vmem:[%s117 + $0xe8] sm:$0xff]
        %v167 = vld [vmem:[%s117 + $0xf0] sm:$0xff]
        %v168 = vld [vmem:[%s117 + $0xf8] sm:$0xff]
        %v169 = vld [vmem:[%s117 + $0x100] sm:$0xff]
        %v170 = vld [vmem:[%s117 + $0x108] sm:$0xff]
        %v171 = vld [vmem:[%s117 + $0x110] sm:$0xff]
        %v172 = vld [vmem:[%s117 + $0x118] sm:$0xff]
        %v173 = vld [vmem:[%s117 + $0x120] sm:$0xff]
        %v174 = vld [vmem:[%s117 + $0x128] sm:$0xff]
        %v175 = vld [vmem:[%s117 + $0x130] sm:$0xff]
        %v176 = vld [vmem:[%s117 + $0x138] sm:$0xff]
        %v177 = vld [vmem:[%s117 + $0x140] sm:$0xff]
        %v178 = vld [vmem:[%s117 + $0x148] sm:$0xff]
        %v179 = vld [vmem:[%s117 + $0x150] sm:$0xff]
        %v180 = vld [vmem:[%s117 + $0x158] sm:$0xff]
        %v181 = vld [vmem:[%s117 + $0x160] sm:$0xff]
        %v182 = vld [vmem:[%s117 + $0x168] sm:$0xff]
        %v183 = vld [vmem:[%s117 + $0x170] sm:$0xff]
        %v184 = vld [vmem:[%s117 + $0x178] sm:$0xff]
        %v185 = vld [vmem:[%s117 + $0x180] sm:$0xff]
        %v186 = vld [vmem:[%s117 + $0x188] sm:$0xff]
        %187 = vst [vmem:[%s136] sm:$0xff] %v137
        %vm188 = vcmask 588800
        %189 = vst.msk [vmem:[%s136 + $0x8] sm:$0xff] %vm188, %v138
        %190 = vst [vmem:[%s136 + $0x10] sm:$0xff] %v139
        %191 = vst.msk [vmem:[%s136 + $0x18] sm:$0xff] %vm188, %v140
        %192 = vst [vmem:[%s136 + $0x20] sm:$0xff] %v141
        %193 = vst.msk [vmem:[%s136 + $0x28] sm:$0xff] %vm188, %v142
        %194 = vst [vmem:[%s136 + $0x30] sm:$0xff] %v143
        %195 = vst.msk [vmem:[%s136 + $0x38] sm:$0xff] %vm188, %v144
        %196 = vst [vmem:[%s136 + $0x40] sm:$0xff] %v145
        %197 = vst.msk [vmem:[%s136 + $0x48] sm:$0xff] %vm188, %v146
        %198 = vst [vmem:[%s136 + $0x50] sm:$0xff] %v147
        %199 = vst.msk [vmem:[%s136 + $0x58] sm:$0xff] %vm188, %v148
        %200 = vst [vmem:[%s136 + $0x60] sm:$0xff] %v149
        %201 = vst.msk [vmem:[%s136 + $0x68] sm:$0xff] %vm188, %v150
        %202 = vst [vmem:[%s136 + $0x70] sm:$0xff] %v151
        %203 = vst.msk [vmem:[%s136 + $0x78] sm:$0xff] %vm188, %v152
        %204 = vst [vmem:[%s136 + $0x80] sm:$0xff] %v153
        %205 = vst.msk [vmem:[%s136 + $0x88] sm:$0xff] %vm188, %v154
        %206 = vst [vmem:[%s136 + $0x90] sm:$0xff] %v155
        %207 = vst.msk [vmem:[%s136 + $0x98] sm:$0xff] %vm188, %v156
        %208 = vst [vmem:[%s136 + $0xa0] sm:$0xff] %v157
        %209 = vst.msk [vmem:[%s136 + $0xa8] sm:$0xff] %vm188, %v158
        %210 = vst [vmem:[%s136 + $0xb0] sm:$0xff] %v159
        %211 = vst.msk [vmem:[%s136 + $0xb8] sm:$0xff] %vm188, %v160
        %212 = vst [vmem:[%s136 + $0xc0] sm:$0xff] %v161
        %213 = vst.msk [vmem:[%s136 + $0xc8] sm:$0xff] %vm188, %v162
        %214 = vst [vmem:[%s136 + $0xd0] sm:$0xff] %v163
        %215 = vst.msk [vmem:[%s136 + $0xd8] sm:$0xff] %vm188, %v164
        %216 = vst [vmem:[%s136 + $0xe0] sm:$0xff] %v165
        %217 = vst.msk [vmem:[%s136 + $0xe8] sm:$0xff] %vm188, %v166
        %218 = vst [vmem:[%s136 + $0xf0] sm:$0xff] %v167
        %219 = vst.msk [vmem:[%s136 + $0xf8] sm:$0xff] %vm188, %v168
        %220 = vst [vmem:[%s136 + $0x100] sm:$0xff] %v169
        %221 = vst.msk [vmem:[%s136 + $0x108] sm:$0xff] %vm188, %v170
        %222 = vst [vmem:[%s136 + $0x110] sm:$0xff] %v171
        %223 = vst.msk [vmem:[%s136 + $0x118] sm:$0xff] %vm188, %v172
        %224 = vst [vmem:[%s136 + $0x120] sm:$0xff] %v173
        %225 = vst.msk [vmem:[%s136 + $0x128] sm:$0xff] %vm188, %v174
        %226 = vst [vmem:[%s136 + $0x130] sm:$0xff] %v175
        %227 = vst.msk [vmem:[%s136 + $0x138] sm:$0xff] %vm188, %v176
        %228 = vst [vmem:[%s136 + $0x140] sm:$0xff] %v177
        %229 = vst.msk [vmem:[%s136 + $0x148] sm:$0xff] %vm188, %v178
        %230 = vst [vmem:[%s136 + $0x150] sm:$0xff] %v179
        %231 = vst.msk [vmem:[%s136 + $0x158] sm:$0xff] %vm188, %v180
        %232 = vst [vmem:[%s136 + $0x160] sm:$0xff] %v181
        %233 = vst.msk [vmem:[%s136 + $0x168] sm:$0xff] %vm188, %v182
        %234 = vst [vmem:[%s136 + $0x170] sm:$0xff] %v183
        %235 = vst.msk [vmem:[%s136 + $0x178] sm:$0xff] %vm188, %v184
        %236 = vst [vmem:[%s136 + $0x180] sm:$0xff] %v185
        %237 = vst.msk [vmem:[%s136 + $0x188] sm:$0xff] %vm188, %v186
        %s238 = sand.u32 %s52, 1
        %s239 = scalar_lea.sflag [#allocation4], %s238
        %s240 = sand.u32 %s52, 1
        %s241 = smul.addr %s240, 400
        %s242 = scalar_lea.vmem [#allocation5], %s241
        // Predicated region
        $region29: #{tpu_custom_call.1} parent=23 // pred_check
          %p243 = pneg %p62
        $region30: #{tpu_custom_call.1} parent=23 // pred_check_branch
          %245 = sbr.rel (%p243) target = $region32
        $region31: #{tpu_custom_call.1} parent=23 // pred_region
          %247 = vsyncadd %s239, 0
          %s248 = smul.addr %s18, 50
          %s249 = smul.addr %s248, 8
          %s250 = scalar_lea.hbm %s1, %s249
          %s251 = sshll.u32 %s242, 4
          %s252 = int_to_ptr.vmem [resolvable:$true] %s251
          %s253 = sshll.u32 %s250, 4
          %s254 = int_to_ptr.hbm [resolvable:$true] %s253
          %259 = dma.vmem_to_hbm [thread:$0]  %s252, 6400, %s254, %s239, 256, 256, 16
        $region32: #{tpu_custom_call.1} parent=23 // pred_fallthru
          _
      $region24: #{tpu_custom_call.1} parent=5 // pred_fallthru
        _
      %p260 = scmp.le.s32.totalorder 2, %s13
      // Predicated region
      $region33: #{tpu_custom_call.1} parent=5 // pred_check
        %p261 = pneg %p260
      $region34: #{tpu_custom_call.1} parent=5 // pred_check_branch
        %263 = sbr.rel (%p261) target = $region36
      $region35: #{tpu_custom_call.1} parent=5 // pred_region
        %s264 = ssub.s32 %s13, 2
        // Predicated region
        $region37: #{tpu_custom_call.1} parent=35 // pred_check
          %p265 = pneg %p68
        $region38: #{tpu_custom_call.1} parent=35 // pred_check_branch
          %267 = sbr.rel (%p265) target = $region40
        $region39: #{tpu_custom_call.1} parent=35 // pred_region
          %s268 = sand.u32 %s53, 1
          %s269 = scalar_lea.sflag [#allocation4], %s268
          %s270 = sand.u32 %s53, 1
          %s271 = smul.addr %s270, 400
          %s272 = scalar_lea.vmem [#allocation5], %s271
          %274 = dma.done %s269, 6400
        $region40: #{tpu_custom_call.1} parent=35 // pred_fallthru
          _
      $region36: #{tpu_custom_call.1} parent=5 // pred_fallthru
        _
    $region6: #{tpu_custom_call.1} parent=1 // loop_footer
      %s17 = sadd.s32 1, %s13
    $region7: #{tpu_custom_call.1} parent=1 // loop_footer_branch
      %12 = sbr.rel target = $region3
    $region8: #{tpu_custom_call.1} parent=1 // loop_exit
      _
    %275 = vsyncpa [#allocation3], 1
    %s276 = scalar_lea.sflag [#allocation3], 1
    %277 = vsyncpa %s276, 1
    %278 = vsyncpa [#allocation4], 1
    %s279 = scalar_lea.sflag [#allocation4], 1
    %280 = vsyncpa %s279, 1

</llo_original>
